<compile_context>
chip_gen: v5e
topology: v5e:2x2
jax: 0.10.0
libtpu: 0.0.40
codegen_flags: <defaults>
</compile_context>

<pallas_src>
import jax
import jax.numpy as jnp
from jax import lax
from jax.experimental import pallas as pl
from jax.experimental.pallas import tpu as pltpu

NEG_SLOPE = 0.01      # F.leaky_relu default
LANE_CHUNK = 256      # lanes processed per inner-loop iteration (multiple of 128)
TB_MAX = 16384        # max batch-lane tile per grid step (multiple of LANE_CHUNK)


def _round_up(x, m):
    return ((x + m - 1) // m) * m


def _cdiv(a, b):
    return (a + b - 1) // b


def _leaky_relu(v):
    return jnp.where(v > 0, v, NEG_SLOPE * v)


def receiver2_kernel(x_ref, w1_ref, b1_ref, w2_ref, b2_ref, o_ref):
    # Transposed layout (batch on lanes):
    # x_ref : (N, TB)    w1_ref: (Hp, N)   b1_ref: (Hp, 1)
    # w2_ref: (N, Hp)    b2_ref: (N, 1)    o_ref : (N, TB)
    w1 = w1_ref[...]
    b1 = b1_ref[...]
    w2 = w2_ref[...]
    b2 = b2_ref[...]

    num_chunks = x_ref.shape[1] // LANE_CHUNK  # static

    def body(c, carry):
        off = pl.multiple_of(c * LANE_CHUNK, LANE_CHUNK)
        xs = _leaky_relu(x_ref[:, pl.ds(off, LANE_CHUNK)])          # (N, C)
        h = jnp.dot(w1, xs, preferred_element_type=jnp.float32) + b1  # (Hp, C)
        h = _leaky_relu(h)
        y = jnp.dot(w2, h, preferred_element_type=jnp.float32) + b2   # (N, C)
        o_ref[:, pl.ds(off, LANE_CHUNK)] = y.astype(o_ref.dtype)
        return carry

    # Unroll short inner loops for LLO scheduler visibility; keep long ones rolled.
    lax.fori_loop(0, num_chunks, body, 0, unroll=(num_chunks <= 16))


def receiver2_forward(x, w1, b1, w2, b2):
    """x: (B, 1, n_colors) float32. Returns (B, n_colors) == forward(x).squeeze(1).

    w1: (n_colors, 100), b1: (100,), w2: (100, n_colors), b2: (n_colors,)
    (nn.Linear weights pre-transposed to (in, out); the wrapper re-transposes
    them into the (out, in) form used by the transposed kernel).
    """
    B, _, N = x.shape
    H = w1.shape[1]
    Hp = _round_up(H, 128)  # pad hidden dim to a full vreg width

    xf = x.reshape(B, N).astype(jnp.float32)

    # Kernel weights in transposed-problem form, zero-padded on the hidden dim.
    w1k = jnp.zeros((Hp, N), jnp.float32).at[:H, :].set(w1.astype(jnp.float32).T)
    b1k = jnp.zeros((Hp, 1), jnp.float32).at[:H, 0].set(b1.astype(jnp.float32))
    w2k = jnp.zeros((N, Hp), jnp.float32).at[:, :H].set(w2.astype(jnp.float32).T)
    b2k = b2.reshape(N, 1).astype(jnp.float32)

    # Batch on the lane axis: pad only to a LANE_CHUNK multiple, then pick the
    # tile / step count.  For multi-step grids, keep the step count even so
    # v7x's two TensorCores get balanced shards of the "parallel" axis.
    B_pad = _round_up(B, LANE_CHUNK)
    steps = _cdiv(B_pad, TB_MAX)
    if steps > 1 and steps % 2 == 1:
        steps += 1
    TB = _round_up(_cdiv(B_pad, steps), LANE_CHUNK)
    B_pad = steps * TB

    # Lane-dense input slab: (N, B_pad), padded batch columns are zero
    # (leaky_relu(0)=0; padded columns are sliced off at the end anyway).
    xT = jnp.zeros((N, B_pad), jnp.float32).at[:, :B].set(xf.T)

    cost = pl.CostEstimate(
        flops=4 * B_pad * N * Hp,
        transcendentals=0,
        bytes_accessed=4 * (2 * B_pad * N + 2 * N * Hp + Hp + N),
    )

    outT = pl.pallas_call(
        receiver2_kernel,
        out_shape=jax.ShapeDtypeStruct((N, B_pad), jnp.float32),
        grid=(steps,),
        in_specs=[
            pl.BlockSpec((N, TB), lambda i: (0, i)),    # x^T tiled over batch lanes
            pl.BlockSpec((Hp, N), lambda i: (0, 0)),    # weights: VMEM-resident
            pl.BlockSpec((Hp, 1), lambda i: (0, 0)),
            pl.BlockSpec((N, Hp), lambda i: (0, 0)),
            pl.BlockSpec((N, 1), lambda i: (0, 0)),
        ],
        out_specs=pl.BlockSpec((N, TB), lambda i: (0, i)),
        compiler_params=pltpu.CompilerParams(
            dimension_semantics=("parallel",)),
        cost_estimate=cost,
    )(xT, w1k, b1k, w2k, b2k)

    return outT[:, :B].T


def receiver2_reference(x, w1, b1, w2, b2):
    h = jnp.where(x > 0, x, NEG_SLOPE * x)
    h = h @ w1 + b1
    h = jnp.where(h > 0, h, NEG_SLOPE * h)
    y = h @ w2 + b2
    return jnp.squeeze(y, axis=1)


if __name__ == "__main__":
    n_colors = 8
    hidden = 100
    batch = 2

    key = jax.random.PRNGKey(0)
    kx, kw1, kb1, kw2, kb2, kx2, kx3 = jax.random.split(key, 7)

    # nn.Linear shapes: fc1 (100, n_colors), fc2 (n_colors, 100);
    # stored pre-transposed as (in, out).
    x = jax.random.normal(kx, (batch, 1, n_colors), dtype=jnp.float32)
    w1 = jax.random.normal(kw1, (n_colors, hidden), dtype=jnp.float32) * 0.1
    b1 = jax.random.normal(kb1, (hidden,), dtype=jnp.float32) * 0.1
    w2 = jax.random.normal(kw2, (hidden, n_colors), dtype=jnp.float32) * 0.1
    b2 = jax.random.normal(kb2, (n_colors,), dtype=jnp.float32) * 0.1

    out = jax.block_until_ready(receiver2_forward(x, w1, b1, w2, b2))
    ref = receiver2_reference(x, w1, b1, w2, b2)
    assert out.shape == (batch, n_colors)
    assert jnp.allclose(out, ref, atol=1e-5, rtol=1e-5)

    # Medium batch: exercises lane padding + unrolled inner chunk loop.
    mid_batch = 2050
    xm = jax.random.normal(kx2, (mid_batch, 1, n_colors), dtype=jnp.float32)
    out_m = jax.block_until_ready(receiver2_forward(xm, w1, b1, w2, b2))
    ref_m = receiver2_reference(xm, w1, b1, w2, b2)
    assert out_m.shape == (mid_batch, n_colors)
    assert jnp.allclose(out_m, ref_m, atol=1e-4, rtol=1e-4)

    # Large batch: exercises multi-step "parallel" grid (even-balanced steps)
    # and the rolled inner chunk loop.
    big_batch = 33000
    xb = jax.random.normal(kx3, (big_batch, 1, n_colors), dtype=jnp.float32)
    out_b = jax.block_until_ready(receiver2_forward(xb, w1, b1, w2, b2))
    ref_b = receiver2_reference(xb, w1, b1, w2, b2)
    assert out_b.shape == (big_batch, n_colors)
    assert jnp.allclose(out_b, ref_b, atol=1e-4, rtol=1e-4)

    print("KERNEL_OK")
</pallas_src>

<mosaic_0001>
module attributes {stable_mosaic.version = 11 : i64} {
  func.func @receiver2_kernel(%arg0: i32, %arg1: memref<8x256xf32, #tpu.memory_space<vmem>>, %arg2: memref<128x8xf32, #tpu.memory_space<vmem>>, %arg3: memref<128x1xf32, #tpu.memory_space<vmem>>, %arg4: memref<8x128xf32, #tpu.memory_space<vmem>>, %arg5: memref<8x1xf32, #tpu.memory_space<vmem>>, %arg6: memref<8x256xf32, #tpu.memory_space<vmem>>) attributes {dimension_semantics = [#tpu.dimension_semantics<parallel>], iteration_bounds = array<i64: 1>, scalar_prefetch = 0 : i64, scratch_operands = 0 : i64, tpu.core_type = #tpu.core_type<tc>, window_params = [{transform_indices = @transform_0, window_bounds = array<i64: 8, 256>}, {pipeline_mode = #tpu.pipeline_mode<synchronous>, transform_indices = @transform_1, window_bounds = array<i64: 128, 8>}, {pipeline_mode = #tpu.pipeline_mode<synchronous>, transform_indices = @transform_2, window_bounds = array<i64: 128, 1>}, {pipeline_mode = #tpu.pipeline_mode<synchronous>, transform_indices = @transform_3, window_bounds = array<i64: 8, 128>}, {pipeline_mode = #tpu.pipeline_mode<synchronous>, transform_indices = @transform_4, window_bounds = array<i64: 8, 1>}, {transform_indices = @transform_5, window_bounds = array<i64: 8, 256>}]} {
    %c0 = arith.constant 0 : index
    %c0_0 = arith.constant 0 : index
    %0 = vector.load %arg2[%c0, %c0_0] : memref<128x8xf32, #tpu.memory_space<vmem>>, vector<128x8xf32>
    %c0_1 = arith.constant 0 : index
    %c0_2 = arith.constant 0 : index
    %1 = vector.load %arg3[%c0_1, %c0_2] : memref<128x1xf32, #tpu.memory_space<vmem>>, vector<128x1xf32>
    %c0_3 = arith.constant 0 : index
    %c0_4 = arith.constant 0 : index
    %2 = vector.load %arg4[%c0_3, %c0_4] : memref<8x128xf32, #tpu.memory_space<vmem>>, vector<8x128xf32>
    %c0_5 = arith.constant 0 : index
    %c0_6 = arith.constant 0 : index
    %3 = vector.load %arg5[%c0_5, %c0_6] : memref<8x1xf32, #tpu.memory_space<vmem>>, vector<8x1xf32>
    %c0_i32 = arith.constant 0 : i32
    %c256_i32 = arith.constant 256 : i32
    %4 = arith.muli %c0_i32, %c256_i32 : i32
    %5 = tpu.assume_multiple %4, 256 : i32
    %c0_7 = arith.constant 0 : index
    %6 = arith.index_cast %5 : i32 to index
    %7 = vector.load %arg1[%c0_7, %6] : memref<8x256xf32, #tpu.memory_space<vmem>>, vector<8x256xf32>
    %cst = arith.constant 0.000000e+00 : f32
    %8 = vector.broadcast %cst : f32 to vector<8x256xf32>
    %9 = arith.cmpf ogt, %7, %8 : vector<8x256xf32>
    %cst_8 = arith.constant 0.00999999977 : f32
    %10 = vector.broadcast %cst_8 : f32 to vector<8x256xf32>
    %11 = arith.mulf %10, %7 : vector<8x256xf32>
    %12 = arith.select %9, %7, %11 : vector<8x256xi1>, vector<8x256xf32>
    %cst_9 = arith.constant dense<0.000000e+00> : vector<128x256xf32>
    %13 = tpu.matmul %0, %12, %cst_9 {dimension_numbers = #tpu.dot_dimension_numbers<[1], [0], [0], [1], [0, 0, 1, 1], [], []>} : vector<128x8xf32>, vector<8x256xf32>, vector<128x256xf32> -> vector<128x256xf32>
    %14 = vector.broadcast %1 : vector<128x1xf32> to vector<128x256xf32>
    %15 = arith.addf %13, %14 : vector<128x256xf32>
    %cst_10 = arith.constant 0.000000e+00 : f32
    %16 = vector.broadcast %cst_10 : f32 to vector<128x256xf32>
    %17 = arith.cmpf ogt, %15, %16 : vector<128x256xf32>
    %cst_11 = arith.constant 0.00999999977 : f32
    %18 = vector.broadcast %cst_11 : f32 to vector<128x256xf32>
    %19 = arith.mulf %18, %15 : vector<128x256xf32>
    %20 = arith.select %17, %15, %19 : vector<128x256xi1>, vector<128x256xf32>
    %cst_12 = arith.constant dense<0.000000e+00> : vector<8x256xf32>
    %21 = tpu.matmul %2, %20, %cst_12 {dimension_numbers = #tpu.dot_dimension_numbers<[1], [0], [0], [1], [0, 0, 1, 1], [], []>} : vector<8x128xf32>, vector<128x256xf32>, vector<8x256xf32> -> vector<8x256xf32>
    %22 = vector.broadcast %3 : vector<8x1xf32> to vector<8x256xf32>
    %23 = arith.addf %21, %22 : vector<8x256xf32>
    %c0_13 = arith.constant 0 : index
    %24 = arith.index_cast %5 : i32 to index
    %25 = vector.load %arg6[%c0_13, %24] : memref<8x256xf32, #tpu.memory_space<vmem>>, vector<8x256xf32>
    tpu.vector_store %arg6[%c0_13, %24], %23 {strides = array<i32>} : memref<8x256xf32, #tpu.memory_space<vmem>>, vector<8x256xf32>,
    %c1_i32 = arith.constant 1 : i32
    return
  }
  func.func @transform_0(%arg0: i32) -> (i32, i32) {
    %c0_i32 = arith.constant 0 : i32
    %c0_i32_0 = arith.constant 0 : i32
    return %c0_i32, %arg0 : i32, i32
  }
  func.func @transform_1(%arg0: i32) -> (i32, i32) {
    %c0_i32 = arith.constant 0 : i32
    %c0_i32_0 = arith.constant 0 : i32
    %c0_i32_1 = arith.constant 0 : i32
    return %c0_i32, %c0_i32_0 : i32, i32
  }
  func.func @transform_2(%arg0: i32) -> (i32, i32) {
    %c0_i32 = arith.constant 0 : i32
    %c0_i32_0 = arith.constant 0 : i32
    %c0_i32_1 = arith.constant 0 : i32
    return %c0_i32, %c0_i32_0 : i32, i32
  }
  func.func @transform_3(%arg0: i32) -> (i32, i32) {
    %c0_i32 = arith.constant 0 : i32
    %c0_i32_0 = arith.constant 0 : i32
    %c0_i32_1 = arith.constant 0 : i32
    return %c0_i32, %c0_i32_0 : i32, i32
  }
  func.func @transform_4(%arg0: i32) -> (i32, i32) {
    %c0_i32 = arith.constant 0 : i32
    %c0_i32_0 = arith.constant 0 : i32
    %c0_i32_1 = arith.constant 0 : i32
    return %c0_i32, %c0_i32_0 : i32, i32
  }
  func.func @transform_5(%arg0: i32) -> (i32, i32) {
    %c0_i32 = arith.constant 0 : i32
    %c0_i32_0 = arith.constant 0 : i32
    return %c0_i32, %arg0 : i32, i32
  }
}

</mosaic_0001>

<llo_original>
// kernel: tpu_custom_call.1
$region0: #{tpu_custom_call.1}
  #allocation0 [shape = 'u32[]', space=smem, size = 0x4, offset = 0x4, fixed_abs, tag = 'smem constant byte address 0x4 - core index']
  #allocation1 [shape = 'u32[72,128]{1,0:T(1,128)}', space=vmem, size = 0x9000, scoped, tag = 'internal scratch']
  %s0 = inlined_call_operand.vmem [shape: f32[8,256], index: 0, kind: input, shape index: {}]
  %s1 = inlined_call_operand.vmem [shape: f32[128,8], index: 1, kind: input, shape index: {}]
  %s2 = inlined_call_operand.vmem [shape: f32[128,1], index: 2, kind: input, shape index: {}]
  %s3 = inlined_call_operand.vmem [shape: f32[8,128], index: 3, kind: input, shape index: {}]
  %s4 = inlined_call_operand.vmem [shape: f32[8,1], index: 4, kind: input, shape index: {}]
  %s5 = inlined_call_operand.hbm [shape: f32[8,256], index: 5, kind: output, shape index: {}]
  %s6 = sld [smem:[#allocation0]]
  $region30: #{tpu_custom_call.1} parent=0
    _
  %s8 = ssub.s32 1, %s6
  %s9 = scalar_select 0, %s8, %s6
  $region1: #{tpu_custom_call.1} parent=0
    #allocation2 [shape = 'u8[8192]{0}', space=vmem, size = 0x2000, scoped, tag = 'output window, operand 0, single buffered']
    #allocation3 [shape = 's32[1]{0}', space=sflag, size = 0x4, scoped, tag = 'scoped memory for tpu_custom_call.1']
    %10 = vsyncpa [#allocation3], 0
    // Predicated region
    $region2: #{tpu_custom_call.1} parent=1 // pred_check
      _
    $region3: #{tpu_custom_call.1} parent=1 // pred_check_branch
      %12 = sbr.rel (0) target = $region5
    $region4: #{tpu_custom_call.1} parent=1 // pred_region
      _
    $region5: #{tpu_custom_call.1} parent=1 // pred_fallthru
      _
    // Predicated region
    $region6: #{tpu_custom_call.1} parent=1 // pred_check
      _
    $region7: #{tpu_custom_call.1} parent=1 // pred_check_branch
      %14 = sbr.rel (0) target = $region9
    $region8: #{tpu_custom_call.1} parent=1 // pred_region
      _
    $region9: #{tpu_custom_call.1} parent=1 // pred_fallthru
      _
    // Predicated region
    $region10: #{tpu_custom_call.1} parent=1 // pred_check
      _
    $region11: #{tpu_custom_call.1} parent=1 // pred_check_branch
      %16 = sbr.rel (0) target = $region13
    $region12: #{tpu_custom_call.1} parent=1 // pred_region
      _
    $region13: #{tpu_custom_call.1} parent=1 // pred_fallthru
      _
    // Predicated region
    $region14: #{tpu_custom_call.1} parent=1 // pred_check
      _
    $region15: #{tpu_custom_call.1} parent=1 // pred_check_branch
      %18 = sbr.rel (0) target = $region17
    $region16: #{tpu_custom_call.1} parent=1 // pred_region
      _
    $region17: #{tpu_custom_call.1} parent=1 // pred_fallthru
      _
    // Predicated region
    $region18: #{tpu_custom_call.1} parent=1 // pred_check
      _
    $region19: #{tpu_custom_call.1} parent=1 // pred_check_branch
      %20 = sbr.rel (0) target = $region21
    $region20: #{tpu_custom_call.1} parent=1 // pred_region
      _
    $region21: #{tpu_custom_call.1} parent=1 // pred_fallthru
      _
    %v21 = vld [vmem:[%s1] sm:$0xff]
    %v22 = vld [vmem:[%s1 + $0x8] sm:$0xff]
    %v23 = vld [vmem:[%s1 + $0x10] sm:$0xff]
    %v24 = vld [vmem:[%s1 + $0x18] sm:$0xff]
    %v25 = vld [vmem:[%s1 + $0x20] sm:$0xff]
    %v26 = vld [vmem:[%s1 + $0x28] sm:$0xff]
    %v27 = vld [vmem:[%s1 + $0x30] sm:$0xff]
    %v28 = vld [vmem:[%s1 + $0x38] sm:$0xff]
    %v29 = vld [vmem:[%s1 + $0x40] sm:$0xff]
    %v30 = vld [vmem:[%s1 + $0x48] sm:$0xff]
    %v31 = vld [vmem:[%s1 + $0x50] sm:$0xff]
    %v32 = vld [vmem:[%s1 + $0x58] sm:$0xff]
    %v33 = vld [vmem:[%s1 + $0x60] sm:$0xff]
    %v34 = vld [vmem:[%s1 + $0x68] sm:$0xff]
    %v35 = vld [vmem:[%s1 + $0x70] sm:$0xff]
    %v36 = vld [vmem:[%s1 + $0x78] sm:$0xff]
    %v37 = vld [vmem:[%s2] sm:$0xff]
    %v38 = vld [vmem:[%s2 + $0x8] sm:$0xff]
    %v39 = vld [vmem:[%s2 + $0x10] sm:$0xff]
    %v40 = vld [vmem:[%s2 + $0x18] sm:$0xff]
    %v41 = vld [vmem:[%s2 + $0x20] sm:$0xff]
    %v42 = vld [vmem:[%s2 + $0x28] sm:$0xff]
    %v43 = vld [vmem:[%s2 + $0x30] sm:$0xff]
    %v44 = vld [vmem:[%s2 + $0x38] sm:$0xff]
    %v45 = vld [vmem:[%s2 + $0x40] sm:$0xff]
    %v46 = vld [vmem:[%s2 + $0x48] sm:$0xff]
    %v47 = vld [vmem:[%s2 + $0x50] sm:$0xff]
    %v48 = vld [vmem:[%s2 + $0x58] sm:$0xff]
    %v49 = vld [vmem:[%s2 + $0x60] sm:$0xff]
    %v50 = vld [vmem:[%s2 + $0x68] sm:$0xff]
    %v51 = vld [vmem:[%s2 + $0x70] sm:$0xff]
    %v52 = vld [vmem:[%s2 + $0x78] sm:$0xff]
    %v53 = vld [vmem:[%s3] sm:$0xff]
    %v54 = vld [vmem:[%s4] sm:$0xff]
    %v55 = vld [vmem:[%s0] sm:$0xff]
    %v56 = vld [vmem:[%s0 + $0x8] sm:$0xff]
    %vm57 = vcmp.gt.f32.partialorder %v55, 0.0
    %vm58 = vcmp.gt.f32.partialorder %v56, 0.0
    %v59 = vmul.f32 %v55, 0.01
    %v60 = vmul.f32 %v56, 0.01
    %v61 = vsel %vm57, %v55, %v59
    %v62 = vsel %vm58, %v56, %v60
    %64 = vset.pattern.permute.xlu0 0
    %65 = vperm.xlu0 %64, %v37
    %v66 = vpop.permute.xlu0 %65
    %69 = vset.pattern.permute.xlu0 0
    %70 = vperm.xlu0 %69, %v38
    %v71 = vpop.permute.xlu0 %70
    %74 = vset.pattern.permute.xlu0 0
    %75 = vperm.xlu0 %74, %v39
    %v76 = vpop.permute.xlu0 %75
    %79 = vset.pattern.permute.xlu0 0
    %80 = vperm.xlu0 %79, %v40
    %v81 = vpop.permute.xlu0 %80
    %84 = vset.pattern.permute.xlu0 0
    %85 = vperm.xlu0 %84, %v41
    %v86 = vpop.permute.xlu0 %85
    %89 = vset.pattern.permute.xlu0 0
    %90 = vperm.xlu0 %89, %v42
    %v91 = vpop.permute.xlu0 %90
    %94 = vset.pattern.permute.xlu0 0
    %95 = vperm.xlu0 %94, %v43
    %v96 = vpop.permute.xlu0 %95
    %99 = vset.pattern.permute.xlu0 0
    %100 = vperm.xlu0 %99, %v44
    %v101 = vpop.permute.xlu0 %100
    %104 = vset.pattern.permute.xlu0 0
    %105 = vperm.xlu0 %104, %v45
    %v106 = vpop.permute.xlu0 %105
    %109 = vset.pattern.permute.xlu0 0
    %110 = vperm.xlu0 %109, %v46
    %v111 = vpop.permute.xlu0 %110
    %114 = vset.pattern.permute.xlu0 0
    %115 = vperm.xlu0 %114, %v47
    %v116 = vpop.permute.xlu0 %115
    %119 = vset.pattern.permute.xlu0 0
    %120 = vperm.xlu0 %119, %v48
    %v121 = vpop.permute.xlu0 %120
    %124 = vset.pattern.permute.xlu0 0
    %125 = vperm.xlu0 %124, %v49
    %v126 = vpop.permute.xlu0 %125
    %129 = vset.pattern.permute.xlu0 0
    %130 = vperm.xlu0 %129, %v50
    %v131 = vpop.permute.xlu0 %130
    %134 = vset.pattern.permute.xlu0 0
    %135 = vperm.xlu0 %134, %v51
    %v136 = vpop.permute.xlu0 %135
    %139 = vset.pattern.permute.xlu0 0
    %140 = vperm.xlu0 %139, %v52
    %v141 = vpop.permute.xlu0 %140
    %vm143 = vcmask 64512
    %v145 = vsel %vm143, %v21, 0
    %v148 = vsel %vm143, %v22, 0
    %v151 = vsel %vm143, %v23, 0
    %v154 = vsel %vm143, %v24, 0
    %v157 = vsel %vm143, %v25, 0
    %v160 = vsel %vm143, %v26, 0
    %v163 = vsel %vm143, %v27, 0
    %v166 = vsel %vm143, %v28, 0
    %v169 = vsel %vm143, %v29, 0
    %v172 = vsel %vm143, %v30, 0
    %v175 = vsel %vm143, %v31, 0
    %v178 = vsel %vm143, %v32, 0
    %v181 = vsel %vm143, %v33, 0
    %v184 = vsel %vm143, %v34, 0
    %v187 = vsel %vm143, %v35, 0
    %v190 = vsel %vm143, %v36, 0
    %192 = vmatpush.msra.mxu0 0.0
    %193 = vmatpush.msra.mxu0 0.0
    %194 = vmatpush.msra.mxu0 0.0
    %195 = vmatpush.msra.mxu0 0.0
    %196 = vmatpush.msra.mxu0 0.0
    %197 = vmatpush.msra.mxu0 0.0
    %198 = vmatpush.msra.mxu0 0.0
    %199 = vmatpush.msra.mxu0 0.0
    %200 = vmatpush.msra.mxu0 0.0
    %201 = vmatpush.msra.mxu0 0.0
    %202 = vmatpush.msra.mxu0 0.0
    %203 = vmatpush.msra.mxu0 0.0
    %204 = vmatpush.msra.mxu0 0.0
    %205 = vmatpush.msra.mxu0 0.0
    %206 = vmatpush.msra.mxu0 0.0
    %207 = vmatpush.msra.mxu0 %v61
    %208 = vmatmul.f32.gmra.mxu0 %v145
    %v209 = vpop.f32.mrf.mxu0
    %v210 = vadd.f32 %v66, %v209
    %211 = vmatmul.f32.gmra.mxu0 %v148
    %v212 = vpop.f32.mrf.mxu0
    %v213 = vadd.f32 %v71, %v212
    %214 = vmatmul.f32.gmra.mxu0 %v151
    %v215 = vpop.f32.mrf.mxu0
    %v216 = vadd.f32 %v76, %v215
    %217 = vmatmul.f32.gmra.mxu0 %v154
    %v218 = vpop.f32.mrf.mxu0
    %v219 = vadd.f32 %v81, %v218
    %220 = vmatmul.f32.gmra.mxu0 %v157
    %v221 = vpop.f32.mrf.mxu0
    %v222 = vadd.f32 %v86, %v221
    %223 = vmatmul.f32.gmra.mxu0 %v160
    %v224 = vpop.f32.mrf.mxu0
    %v225 = vadd.f32 %v91, %v224
    %226 = vmatmul.f32.gmra.mxu0 %v163
    %v227 = vpop.f32.mrf.mxu0
    %v228 = vadd.f32 %v96, %v227
    %229 = vmatmul.f32.gmra.mxu0 %v166
    %v230 = vpop.f32.mrf.mxu0
    %v231 = vadd.f32 %v101, %v230
    %232 = vmatmul.f32.gmra.mxu0 %v169
    %v233 = vpop.f32.mrf.mxu0
    %v234 = vadd.f32 %v106, %v233
    %235 = vmatmul.f32.gmra.mxu0 %v172
    %v236 = vpop.f32.mrf.mxu0
    %v237 = vadd.f32 %v111, %v236
    %238 = vmatmul.f32.gmra.mxu0 %v175
    %v239 = vpop.f32.mrf.mxu0
    %v240 = vadd.f32 %v116, %v239
    %241 = vmatmul.f32.gmra.mxu0 %v178
    %v242 = vpop.f32.mrf.mxu0
    %v243 = vadd.f32 %v121, %v242
    %244 = vmatmul.f32.gmra.mxu0 %v181
    %v245 = vpop.f32.mrf.mxu0
    %v246 = vadd.f32 %v126, %v245
    %247 = vmatmul.f32.gmra.mxu0 %v184
    %v248 = vpop.f32.mrf.mxu0
    %v249 = vadd.f32 %v131, %v248
    %250 = vmatmul.f32.gmra.mxu0 %v187
    %v251 = vpop.f32.mrf.mxu0
    %v252 = vadd.f32 %v136, %v251
    %253 = vmatmul.f32.gmra.mxu0 %v190
    %v254 = vpop.f32.mrf.mxu0
    %v255 = vadd.f32 %v141, %v254
    %256 = vdwg.mxu0
    %257 = vmatpush.msra.mxu0 0.0
    %258 = vmatpush.msra.mxu0 0.0
    %259 = vmatpush.msra.mxu0 0.0
    %260 = vmatpush.msra.mxu0 0.0
    %261 = vmatpush.msra.mxu0 0.0
    %262 = vmatpush.msra.mxu0 0.0
    %263 = vmatpush.msra.mxu0 0.0
    %264 = vmatpush.msra.mxu0 0.0
    %265 = vmatpush.msra.mxu0 0.0
    %266 = vmatpush.msra.mxu0 0.0
    %267 = vmatpush.msra.mxu0 0.0
    %268 = vmatpush.msra.mxu0 0.0
    %269 = vmatpush.msra.mxu0 0.0
    %270 = vmatpush.msra.mxu0 0.0
    %271 = vmatpush.msra.mxu0 0.0
    %272 = vmatpush.msra.mxu0 %v62
    %273 = vmatmul.f32.gmra.mxu0 %v145
    %v274 = vpop.f32.mrf.mxu0
    %v275 = vadd.f32 %v66, %v274
    %276 = vmatmul.f32.gmra.mxu0 %v148
    %v277 = vpop.f32.mrf.mxu0
    %v278 = vadd.f32 %v71, %v277
    %279 = vmatmul.f32.gmra.mxu0 %v151
    %v280 = vpop.f32.mrf.mxu0
    %v281 = vadd.f32 %v76, %v280
    %282 = vmatmul.f32.gmra.mxu0 %v154
    %v283 = vpop.f32.mrf.mxu0
    %v284 = vadd.f32 %v81, %v283
    %285 = vmatmul.f32.gmra.mxu0 %v157
    %v286 = vpop.f32.mrf.mxu0
    %v287 = vadd.f32 %v86, %v286
    %288 = vmatmul.f32.gmra.mxu0 %v160
    %v289 = vpop.f32.mrf.mxu0
    %v290 = vadd.f32 %v91, %v289
    %291 = vmatmul.f32.gmra.mxu0 %v163
    %v292 = vpop.f32.mrf.mxu0
    %v293 = vadd.f32 %v96, %v292
    %294 = vmatmul.f32.gmra.mxu0 %v166
    %v295 = vpop.f32.mrf.mxu0
    %v296 = vadd.f32 %v101, %v295
    %297 = vmatmul.f32.gmra.mxu0 %v169
    %v298 = vpop.f32.mrf.mxu0
    %v299 = vadd.f32 %v106, %v298
    %300 = vmatmul.f32.gmra.mxu0 %v172
    %v301 = vpop.f32.mrf.mxu0
    %v302 = vadd.f32 %v111, %v301
    %303 = vmatmul.f32.gmra.mxu0 %v175
    %v304 = vpop.f32.mrf.mxu0
    %v305 = vadd.f32 %v116, %v304
    %306 = vmatmul.f32.gmra.mxu0 %v178
    %v307 = vpop.f32.mrf.mxu0
    %v308 = vadd.f32 %v121, %v307
    %309 = vmatmul.f32.gmra.mxu0 %v181
    %v310 = vpop.f32.mrf.mxu0
    %v311 = vadd.f32 %v126, %v310
    %312 = vmatmul.f32.gmra.mxu0 %v184
    %v313 = vpop.f32.mrf.mxu0
    %v314 = vadd.f32 %v131, %v313
    %315 = vmatmul.f32.gmra.mxu0 %v187
    %v316 = vpop.f32.mrf.mxu0
    %v317 = vadd.f32 %v136, %v316
    %318 = vmatmul.f32.gmra.mxu0 %v190
    %v319 = vpop.f32.mrf.mxu0
    %v320 = vadd.f32 %v141, %v319
    %321 = vdwg.mxu0
    %vm322 = vcmp.gt.f32.partialorder %v210, 0.0
    %vm323 = vcmp.gt.f32.partialorder %v275, 0.0
    %vm324 = vcmp.gt.f32.partialorder %v213, 0.0
    %vm325 = vcmp.gt.f32.partialorder %v278, 0.0
    %vm326 = vcmp.gt.f32.partialorder %v216, 0.0
    %vm327 = vcmp.gt.f32.partialorder %v281, 0.0
    %vm328 = vcmp.gt.f32.partialorder %v219, 0.0
    %vm329 = vcmp.gt.f32.partialorder %v284, 0.0
    %vm330 = vcmp.gt.f32.partialorder %v222, 0.0
    %vm331 = vcmp.gt.f32.partialorder %v287, 0.0
    %vm332 = vcmp.gt.f32.partialorder %v225, 0.0
    %vm333 = vcmp.gt.f32.partialorder %v290, 0.0
    %vm334 = vcmp.gt.f32.partialorder %v228, 0.0
    %vm335 = vcmp.gt.f32.partialorder %v293, 0.0
    %vm336 = vcmp.gt.f32.partialorder %v231, 0.0
    %vm337 = vcmp.gt.f32.partialorder %v296, 0.0
    %vm338 = vcmp.gt.f32.partialorder %v234, 0.0
    %vm339 = vcmp.gt.f32.partialorder %v299, 0.0
    %vm340 = vcmp.gt.f32.partialorder %v237, 0.0
    %vm341 = vcmp.gt.f32.partialorder %v302, 0.0
    %vm342 = vcmp.gt.f32.partialorder %v240, 0.0
    %vm343 = vcmp.gt.f32.partialorder %v305, 0.0
    %vm344 = vcmp.gt.f32.partialorder %v243, 0.0
    %vm345 = vcmp.gt.f32.partialorder %v308, 0.0
    %vm346 = vcmp.gt.f32.partialorder %v246, 0.0
    %vm347 = vcmp.gt.f32.partialorder %v311, 0.0
    %vm348 = vcmp.gt.f32.partialorder %v249, 0.0
    %vm349 = vcmp.gt.f32.partialorder %v314, 0.0
    %vm350 = vcmp.gt.f32.partialorder %v252, 0.0
    %vm351 = vcmp.gt.f32.partialorder %v317, 0.0
    %vm352 = vcmp.gt.f32.partialorder %v255, 0.0
    %vm353 = vcmp.gt.f32.partialorder %v320, 0.0
    %v354 = vmul.f32 %v210, 0.01
    %v355 = vmul.f32 %v275, 0.01
    %v356 = vmul.f32 %v213, 0.01
    %v357 = vmul.f32 %v278, 0.01
    %v358 = vmul.f32 %v216, 0.01
    %v359 = vmul.f32 %v281, 0.01
    %v360 = vmul.f32 %v219, 0.01
    %v361 = vmul.f32 %v284, 0.01
    %v362 = vmul.f32 %v222, 0.01
    %v363 = vmul.f32 %v287, 0.01
    %v364 = vmul.f32 %v225, 0.01
    %v365 = vmul.f32 %v290, 0.01
    %v366 = vmul.f32 %v228, 0.01
    %v367 = vmul.f32 %v293, 0.01
    %v368 = vmul.f32 %v231, 0.01
    %v369 = vmul.f32 %v296, 0.01
    %v370 = vmul.f32 %v234, 0.01
    %v371 = vmul.f32 %v299, 0.01
    %v372 = vmul.f32 %v237, 0.01
    %v373 = vmul.f32 %v302, 0.01
    %v374 = vmul.f32 %v240, 0.01
    %v375 = vmul.f32 %v305, 0.01
    %v376 = vmul.f32 %v243, 0.01
    %v377 = vmul.f32 %v308, 0.01
    %v378 = vmul.f32 %v246, 0.01
    %v379 = vmul.f32 %v311, 0.01
    %v380 = vmul.f32 %v249, 0.01
    %v381 = vmul.f32 %v314, 0.01
    %v382 = vmul.f32 %v252, 0.01
    %v383 = vmul.f32 %v317, 0.01
    %v384 = vmul.f32 %v255, 0.01
    %v385 = vmul.f32 %v320, 0.01
    %v386 = vsel %vm322, %v210, %v354
    %v387 = vsel %vm323, %v275, %v355
    %v388 = vsel %vm324, %v213, %v356
    %v389 = vsel %vm325, %v278, %v357
    %v390 = vsel %vm326, %v216, %v358
    %v391 = vsel %vm327, %v281, %v359
    %v392 = vsel %vm328, %v219, %v360
    %v393 = vsel %vm329, %v284, %v361
    %v394 = vsel %vm330, %v222, %v362
    %v395 = vsel %vm331, %v287, %v363
    %v396 = vsel %vm332, %v225, %v364
    %v397 = vsel %vm333, %v290, %v365
    %v398 = vsel %vm334, %v228, %v366
    %v399 = vsel %vm335, %v293, %v367
    %v400 = vsel %vm336, %v231, %v368
    %v401 = vsel %vm337, %v296, %v369
    %v402 = vsel %vm338, %v234, %v370
    %v403 = vsel %vm339, %v299, %v371
    %v404 = vsel %vm340, %v237, %v372
    %v405 = vsel %vm341, %v302, %v373
    %v406 = vsel %vm342, %v240, %v374
    %v407 = vsel %vm343, %v305, %v375
    %v408 = vsel %vm344, %v243, %v376
    %v409 = vsel %vm345, %v308, %v377
    %v410 = vsel %vm346, %v246, %v378
    %v411 = vsel %vm347, %v311, %v379
    %v412 = vsel %vm348, %v249, %v380
    %v413 = vsel %vm349, %v314, %v381
    %v414 = vsel %vm350, %v252, %v382
    %v415 = vsel %vm351, %v317, %v383
    %v416 = vsel %vm352, %v255, %v384
    %v417 = vsel %vm353, %v320, %v385
    %419 = vset.pattern.permute.xlu0 0
    %420 = vperm.xlu0 %419, %v54
    %v421 = vpop.permute.xlu0 %420
    %423 = vmatpush.msra.mxu0 %v416
    %424 = vmatpush.msra.mxu0 %v414
    %425 = vmatpush.msra.mxu0 %v412
    %426 = vmatpush.msra.mxu0 %v410
    %427 = vmatpush.msra.mxu0 %v408
    %428 = vmatpush.msra.mxu0 %v406
    %429 = vmatpush.msra.mxu0 %v404
    %430 = vmatpush.msra.mxu0 %v402
    %431 = vmatpush.msra.mxu0 %v400
    %432 = vmatpush.msra.mxu0 %v398
    %433 = vmatpush.msra.mxu0 %v396
    %434 = vmatpush.msra.mxu0 %v394
    %435 = vmatpush.msra.mxu0 %v392
    %436 = vmatpush.msra.mxu0 %v390
    %437 = vmatpush.msra.mxu0 %v388
    %438 = vmatpush.msra.mxu0 %v386
    %439 = vmatmul.f32.gmra.mxu0 %v53
    %v440 = vpop.f32.mrf.mxu0
    %v441 = vadd.f32 %v421, %v440
    %442 = vdwg.mxu0
    %443 = vmatpush.msra.mxu0 %v417
    %444 = vmatpush.msra.mxu0 %v415
    %445 = vmatpush.msra.mxu0 %v413
    %446 = vmatpush.msra.mxu0 %v411
    %447 = vmatpush.msra.mxu0 %v409
    %448 = vmatpush.msra.mxu0 %v407
    %449 = vmatpush.msra.mxu0 %v405
    %450 = vmatpush.msra.mxu0 %v403
    %451 = vmatpush.msra.mxu0 %v401
    %452 = vmatpush.msra.mxu0 %v399
    %453 = vmatpush.msra.mxu0 %v397
    %454 = vmatpush.msra.mxu0 %v395
    %455 = vmatpush.msra.mxu0 %v393
    %456 = vmatpush.msra.mxu0 %v391
    %457 = vmatpush.msra.mxu0 %v389
    %458 = vmatpush.msra.mxu0 %v387
    %459 = vmatmul.f32.gmra.mxu0 %v53
    %v460 = vpop.f32.mrf.mxu0
    %v461 = vadd.f32 %v421, %v460
    %462 = vdwg.mxu0
    %463 = vst [vmem:[#allocation2] sm:$0xff] %v441
    %464 = vst [vmem:[#allocation2 + $0x8] sm:$0xff] %v461
    // Predicated region
    $region22: #{tpu_custom_call.1} parent=1 // pred_check
      _
    $region23: #{tpu_custom_call.1} parent=1 // pred_check_branch
      %466 = sbr.rel (0) target = $region25
    $region24: #{tpu_custom_call.1} parent=1 // pred_region
      %468 = vsyncadd [#allocation3], 0
      %s470 = sshll.u32 [#allocation2], 4
      %s471 = int_to_ptr.vmem [resolvable:$true] %s470
      %s472 = sshll.u32 %s5, 4
      %s473 = int_to_ptr.hbm [resolvable:$true] %s472
      %475 = dma.vmem_to_hbm [thread:$0]  %s471, 256, %s473, [#allocation3]
    $region25: #{tpu_custom_call.1} parent=1 // pred_fallthru
      _
    // Predicated region
    $region26: #{tpu_custom_call.1} parent=1 // pred_check
      _
    $region27: #{tpu_custom_call.1} parent=1 // pred_check_branch
      %477 = sbr.rel (0) target = $region29
    $region28: #{tpu_custom_call.1} parent=1 // pred_region
      %479 = dma.done [#allocation3], 256
    $region29: #{tpu_custom_call.1} parent=1 // pred_fallthru
      _
    %480 = vsyncpa [#allocation3], 1

</llo_original>
